<compile_context>
chip_gen: v7x
topology: tpu7x:2x2x1
jax: 0.10.0
libtpu: 0.0.40
codegen_flags: <defaults>
</compile_context>

<pallas_src>
import jax
import jax.numpy as jnp
from jax.experimental import pallas as pl
from jax.experimental.pallas import tpu as pltpu

LANES = 128           # lanes per row of the (rows, 128) view: 32 batches * 4 values
MAX_TILE_ROWS = 4096  # 4096 * 128 * 4B = 2 MiB / buffer; in+out double-buffered ~8 MiB
MIN_BLOCKS = 4        # >= 2 grid steps per TensorCore on v7x megacore
VMEM_LIMIT_BYTES = 32 * 1024 * 1024


def _shift_lanes(v, k):
    """result[:, l] = v[:, l + k]  (lane rotation; pltpu.roll follows jnp.roll:
    roll(v, s)[l] = v[l - s], so fetching from l + k uses shift = (-k) mod L).
    Wrapped entries are never consumed: every lane only reads within its own
    4-lane batch group, and 4 divides the 128-lane row."""
    L = v.shape[-1]
    return pltpu.roll(v, shift=(-k) % L, axis=1)


def gda_kernel(p_ref, q_ref, z_ref, o_ref):
    # z_ref / o_ref: (tile_rows, 128) f32.  Lane l holds field r = l % 4 of the
    # batch group l // 4:
    #   r=0 -> Z[b,0,0], r=1 -> Z[b,0,1], r=2 -> Z[b,1,0], r=3 -> Z[b,1,1]

    # ---- lane patterns, built once per invocation at (1, 128) and broadcast ----
    lane = jax.lax.broadcasted_iota(jnp.int32, (1, LANES), 1)
    r = lane & 3
    feat0 = (r & 1) == 0          # lanes holding feature i = 0
    tok0 = r < 2                  # lanes belonging to token n = 0

    # P, Q scalars from SMEM.
    p00 = p_ref[0, 0]; p01 = p_ref[0, 1]; p10 = p_ref[1, 0]; p11 = p_ref[1, 1]
    q00 = q_ref[0, 0]; q01 = q_ref[0, 1]; q10 = q_ref[1, 0]; q11 = q_ref[1, 1]

    # Per-lane coefficients for the merged P/Q row-apply (one (1,128) vreg each):
    #   r=0: (p00,p01)  r=1: (p11,p10)  r=2: (q00,q01)  r=3: (q11,q10)
    coef_a = jnp.where(tok0, jnp.where(feat0, p00, p11), jnp.where(feat0, q00, q11))
    coef_b = jnp.where(tok0, jnp.where(feat0, p01, p10), jnp.where(feat0, q01, q10))
    gate = jnp.where(feat0, jnp.float32(1.0), jnp.float32(-1.0))   # (+1, -1) over i

    # ---- per-element work on the data tile ----
    x = z_ref[...]

    # Partner = the other feature of the *same* token, per lane.
    partner = jnp.where(feat0, _shift_lanes(x, 1), _shift_lanes(x, -1))

    # Merged row-apply, consumed on disjoint lanes:
    #   token-0 lanes: c = (P @ Z[b,0,:])_{r&1}   (the "keys")
    #   token-1 lanes: c = (Q @ Z[b,1,:])_{r&1}
    c = coef_a * x + coef_b * partner

    # keys[b,0,i] aligned onto every lane (token-1 lanes fetch from 2 lanes left).
    keys = jnp.where(tok0, c, _shift_lanes(c, -2))
    # (Q @ Z[b,1,:])_i aligned onto every lane (token-0 lanes fetch from 2 right).
    qz1 = jnp.where(tok0, _shift_lanes(c, 2), c)

    # scores[b,n,1] = Z[b,n,:] . (Q @ Z[b,1,:]) : per-lane product, then pair-sum.
    w = x * qz1
    scores = w + jnp.where(feat0, _shift_lanes(w, 1), _shift_lanes(w, -1))

    # out[b,n,i] = scores[b,n,1] * keys[b,0,i];  result = Z + out * gate
    o_ref[...] = x + (scores * keys) * gate


def _choose_tile_rows(rows):
    """Rows per block: large enough to amortise per-step overhead, small enough to
    fit VMEM everywhere, and split into >= MIN_BLOCKS blocks when possible so both
    v7x TensorCores get >= 2 pipelined grid steps each."""
    if rows <= 8:
        return rows                                  # single full-extent block
    target = -(-rows // MIN_BLOCKS)                  # ~rows / MIN_BLOCKS
    target = -(-target // 8) * 8                     # round up to sublane multiple
    return max(8, min(MAX_TILE_ROWS, target))


@jax.jit
def gda_forward(Z, P, Q):
    """Z: (B, 2, 2) -> (B, 2, 2) (matches GDALayer.forward). Compute is f32."""
    B = Z.shape[0]
    assert Z.shape == (B, 2, 2)
    out_dtype = Z.dtype

    # Natural contiguous layout; reshapes are free under jit.
    flat = Z.reshape(B * 4).astype(jnp.float32)

    n_elems = B * 4
    rows = pl.cdiv(n_elems, LANES)
    padded = rows * LANES
    if padded != n_elems:
        # Only pads up to the 128-lane boundary (B % 32 != 0). Costs one extra HBM
        # pass; keep B a multiple of 32 upstream for the zero-copy fast path.
        flat = jnp.pad(flat, (0, padded - n_elems))
    z2d = flat.reshape(rows, LANES)

    tile_rows = _choose_tile_rows(rows)
    num_blocks = pl.cdiv(rows, tile_rows)            # ragged last block is masked

    out2d = pl.pallas_call(
        gda_kernel,
        out_shape=jax.ShapeDtypeStruct((rows, LANES), jnp.float32),
        grid_spec=pltpu.PrefetchScalarGridSpec(
            num_scalar_prefetch=0,
            grid=(num_blocks,),
            in_specs=[
                pl.BlockSpec(memory_space=pltpu.MemorySpace.SMEM),    # P (2,2)
                pl.BlockSpec(memory_space=pltpu.MemorySpace.SMEM),    # Q (2,2)
                pl.BlockSpec((tile_rows, LANES), lambda i: (i, 0)),   # Z tile
            ],
            out_specs=pl.BlockSpec((tile_rows, LANES), lambda i: (i, 0)),
        ),
        compiler_params=pltpu.CompilerParams(
            dimension_semantics=("parallel",),
            vmem_limit_bytes=VMEM_LIMIT_BYTES,
        ),
        cost_estimate=pl.CostEstimate(
            flops=12 * rows * LANES,
            transcendentals=0,
            bytes_accessed=2 * rows * LANES * 4,
        ),
    )(P.astype(jnp.float32), Q.astype(jnp.float32), z2d)

    out_flat = out2d.reshape(padded)
    if padded != n_elems:
        out_flat = out_flat[:n_elems]
    return out_flat.reshape(B, 2, 2).astype(out_dtype)


def gda_reference(Z, P, Q):
    """Plain-JAX transcription of the PyTorch forward (for verification)."""
    scores = jnp.einsum('BNi,ij,BMj->BNM', Z, Q, Z)
    keys = jnp.einsum('ij,BNj->BNi', P, Z)
    tril = jnp.array([[0.0, 0.0], [1.0, 0.0]], dtype=Z.dtype)
    out = jnp.einsum('BNM,ML,BLi->BNi', scores, tril, keys)
    gate = jnp.array([1.0, -1.0], dtype=Z.dtype).reshape(1, 1, 2)
    return Z + out * gate


if __name__ == "__main__":
    key = jax.random.PRNGKey(0)
    k_p, k_q, k_z, k_z2, k_z3 = jax.random.split(key, 5)

    # Deterministic parameter init mirroring nn.init.normal_(.., 0.0, var), var=0.001.
    std = 0.001
    P = (jax.random.normal(k_p, (2, 2)) * std).astype(jnp.float32)
    Q = (jax.random.normal(k_q, (2, 2)) * std).astype(jnp.float32)

    # Small shape consistent with the module's forward (pad path, B % 32 != 0).
    B = 8
    Z = jax.random.normal(k_z, (B, 2, 2), dtype=jnp.float32)
    out = jax.block_until_ready(gda_forward(Z, P, Q))
    assert out.shape == (B, 2, 2)
    assert jnp.allclose(out, gda_reference(Z, P, Q), atol=1e-6, rtol=1e-6), \
        "Pallas kernel mismatch vs reference (B=8)"

    # Aligned fast path (no pad, no slice), single full-extent block.
    B2 = 32
    Z2 = jax.random.normal(k_z2, (B2, 2, 2), dtype=jnp.float32)
    out2 = jax.block_until_ready(gda_forward(Z2, P, Q))
    assert jnp.allclose(out2, gda_reference(Z2, P, Q), atol=1e-6, rtol=1e-6), \
        "Pallas kernel mismatch vs reference (B=32)"

    # Multi-block megacore-parallel path with a ragged final block (33 rows, tile 16).
    B3 = 1056
    Z3 = jax.random.normal(k_z3, (B3, 2, 2), dtype=jnp.float32)
    out3 = jax.block_until_ready(gda_forward(Z3, P, Q))
    assert jnp.allclose(out3, gda_reference(Z3, P, Q), atol=1e-6, rtol=1e-6), \
        "Pallas kernel mismatch vs reference (B=1056)"

    print("KERNEL_OK")
</pallas_src>

<mosaic_0001>
module attributes {stable_mosaic.version = 11 : i64} {
  func.func @gda_kernel(%arg0: i32, %arg1: memref<2x2xf32, #tpu.memory_space<smem>>, %arg2: memref<2x2xf32, #tpu.memory_space<smem>>, %arg3: memref<1x128xf32, #tpu.memory_space<vmem>>, %arg4: memref<1x128xf32, #tpu.memory_space<vmem>>) attributes {dimension_semantics = [#tpu.dimension_semantics<parallel>], iteration_bounds = array<i64: 1>, scalar_prefetch = 0 : i64, scratch_operands = 0 : i64, tpu.core_type = #tpu.core_type<tc>, window_params = [{transform_indices = @transform_0, window_bounds = array<i64: 2, 2>}, {transform_indices = @transform_1, window_bounds = array<i64: 2, 2>}, {transform_indices = @transform_2, window_bounds = array<i64: 1, 128>}, {transform_indices = @transform_3, window_bounds = array<i64: 1, 128>}]} {
    %0 = tpu.iota {dimensions = array<i32: 1>} : vector<1x128xi32>
    %c3_i32 = arith.constant 3 : i32
    %1 = vector.broadcast %c3_i32 : i32 to vector<1x128xi32>
    %2 = arith.andi %0, %1 : vector<1x128xi32>
    %c1_i32 = arith.constant 1 : i32
    %3 = vector.broadcast %c1_i32 : i32 to vector<1x128xi32>
    %4 = arith.andi %2, %3 : vector<1x128xi32>
    %c0_i32 = arith.constant 0 : i32
    %5 = vector.broadcast %c0_i32 : i32 to vector<1x128xi32>
    %6 = arith.cmpi eq, %4, %5 : vector<1x128xi32>
    %c2_i32 = arith.constant 2 : i32
    %7 = vector.broadcast %c2_i32 : i32 to vector<1x128xi32>
    %8 = arith.cmpi slt, %2, %7 : vector<1x128xi32>
    %c0 = arith.constant 0 : index
    %c0_0 = arith.constant 0 : index
    %9 = memref.load %arg1[%c0, %c0_0] : memref<2x2xf32, #tpu.memory_space<smem>>
    %c0_1 = arith.constant 0 : index
    %c1 = arith.constant 1 : index
    %10 = memref.load %arg1[%c0_1, %c1] : memref<2x2xf32, #tpu.memory_space<smem>>
    %c1_2 = arith.constant 1 : index
    %c0_3 = arith.constant 0 : index
    %11 = memref.load %arg1[%c1_2, %c0_3] : memref<2x2xf32, #tpu.memory_space<smem>>
    %c1_4 = arith.constant 1 : index
    %c1_5 = arith.constant 1 : index
    %12 = memref.load %arg1[%c1_4, %c1_5] : memref<2x2xf32, #tpu.memory_space<smem>>
    %c0_6 = arith.constant 0 : index
    %c0_7 = arith.constant 0 : index
    %13 = memref.load %arg2[%c0_6, %c0_7] : memref<2x2xf32, #tpu.memory_space<smem>>
    %c0_8 = arith.constant 0 : index
    %c1_9 = arith.constant 1 : index
    %14 = memref.load %arg2[%c0_8, %c1_9] : memref<2x2xf32, #tpu.memory_space<smem>>
    %c1_10 = arith.constant 1 : index
    %c0_11 = arith.constant 0 : index
    %15 = memref.load %arg2[%c1_10, %c0_11] : memref<2x2xf32, #tpu.memory_space<smem>>
    %c1_12 = arith.constant 1 : index
    %c1_13 = arith.constant 1 : index
    %16 = memref.load %arg2[%c1_12, %c1_13] : memref<2x2xf32, #tpu.memory_space<smem>>
    %17 = vector.broadcast %9 : f32 to vector<1x128xf32>
    %18 = vector.broadcast %12 : f32 to vector<1x128xf32>
    %19 = arith.select %6, %17, %18 : vector<1x128xi1>, vector<1x128xf32>
    %20 = vector.broadcast %13 : f32 to vector<1x128xf32>
    %21 = vector.broadcast %16 : f32 to vector<1x128xf32>
    %22 = arith.select %6, %20, %21 : vector<1x128xi1>, vector<1x128xf32>
    %23 = arith.select %8, %19, %22 : vector<1x128xi1>, vector<1x128xf32>
    %24 = vector.broadcast %10 : f32 to vector<1x128xf32>
    %25 = vector.broadcast %11 : f32 to vector<1x128xf32>
    %26 = arith.select %6, %24, %25 : vector<1x128xi1>, vector<1x128xf32>
    %27 = vector.broadcast %14 : f32 to vector<1x128xf32>
    %28 = vector.broadcast %15 : f32 to vector<1x128xf32>
    %29 = arith.select %6, %27, %28 : vector<1x128xi1>, vector<1x128xf32>
    %30 = arith.select %8, %26, %29 : vector<1x128xi1>, vector<1x128xf32>
    %cst = arith.constant 1.000000e+00 : f32
    %cst_14 = arith.constant -1.000000e+00 : f32
    %31 = vector.broadcast %cst : f32 to vector<1x128xf32>
    %32 = vector.broadcast %cst_14 : f32 to vector<1x128xf32>
    %33 = arith.select %6, %31, %32 : vector<1x128xi1>, vector<1x128xf32>
    %c0_15 = arith.constant 0 : index
    %c0_16 = arith.constant 0 : index
    %34 = vector.load %arg3[%c0_15, %c0_16] : memref<1x128xf32, #tpu.memory_space<vmem>>, vector<1x128xf32>
    %c127_i32 = arith.constant 127 : i32
    %35 = tpu.dynamic_rotate %34 by %c127_i32 dim 1 : vector<1x128xf32>, i32 -> vector<1x128xf32>
    %c1_i32_17 = arith.constant 1 : i32
    %36 = tpu.dynamic_rotate %34 by %c1_i32_17 dim 1 : vector<1x128xf32>, i32 -> vector<1x128xf32>
    %37 = arith.select %6, %35, %36 : vector<1x128xi1>, vector<1x128xf32>
    %38 = arith.mulf %23, %34 : vector<1x128xf32>
    %39 = arith.mulf %30, %37 : vector<1x128xf32>
    %40 = arith.addf %38, %39 : vector<1x128xf32>
    %c2_i32_18 = arith.constant 2 : i32
    %41 = tpu.dynamic_rotate %40 by %c2_i32_18 dim 1 : vector<1x128xf32>, i32 -> vector<1x128xf32>
    %42 = arith.select %8, %40, %41 : vector<1x128xi1>, vector<1x128xf32>
    %c126_i32 = arith.constant 126 : i32
    %43 = tpu.dynamic_rotate %40 by %c126_i32 dim 1 : vector<1x128xf32>, i32 -> vector<1x128xf32>
    %44 = arith.select %8, %43, %40 : vector<1x128xi1>, vector<1x128xf32>
    %45 = arith.mulf %34, %44 : vector<1x128xf32>
    %c127_i32_19 = arith.constant 127 : i32
    %46 = tpu.dynamic_rotate %45 by %c127_i32_19 dim 1 : vector<1x128xf32>, i32 -> vector<1x128xf32>
    %c1_i32_20 = arith.constant 1 : i32
    %47 = tpu.dynamic_rotate %45 by %c1_i32_20 dim 1 : vector<1x128xf32>, i32 -> vector<1x128xf32>
    %48 = arith.select %6, %46, %47 : vector<1x128xi1>, vector<1x128xf32>
    %49 = arith.addf %45, %48 : vector<1x128xf32>
    %50 = arith.mulf %49, %42 : vector<1x128xf32>
    %51 = arith.mulf %50, %33 : vector<1x128xf32>
    %52 = arith.addf %34, %51 : vector<1x128xf32>
    %c0_21 = arith.constant 0 : index
    %c0_22 = arith.constant 0 : index
    %53 = vector.load %arg4[%c0_21, %c0_22] : memref<1x128xf32, #tpu.memory_space<vmem>>, vector<1x128xf32>
    tpu.vector_store %arg4[%c0_21, %c0_22], %52 {strides = array<i32>} : memref<1x128xf32, #tpu.memory_space<vmem>>, vector<1x128xf32>,
    return
  }
  func.func @transform_0(%arg0: i32) -> (i32, i32) {
    %c0_i32 = arith.constant 0 : i32
    %c0_i32_0 = arith.constant 0 : i32
    %c0_i32_1 = arith.constant 0 : i32
    return %c0_i32, %c0_i32_0 : i32, i32
  }
  func.func @transform_1(%arg0: i32) -> (i32, i32) {
    %c0_i32 = arith.constant 0 : i32
    %c0_i32_0 = arith.constant 0 : i32
    %c0_i32_1 = arith.constant 0 : i32
    return %c0_i32, %c0_i32_0 : i32, i32
  }
  func.func @transform_2(%arg0: i32) -> (i32, i32) {
    %c0_i32 = arith.constant 0 : i32
    %c0_i32_0 = arith.constant 0 : i32
    return %arg0, %c0_i32 : i32, i32
  }
  func.func @transform_3(%arg0: i32) -> (i32, i32) {
    %c0_i32 = arith.constant 0 : i32
    %c0_i32_0 = arith.constant 0 : i32
    return %arg0, %c0_i32 : i32, i32
  }
}

</mosaic_0001>

<llo_original>
// kernel: gda_forward.1
$region0: #{gda_forward.1}
  #allocation0 [shape = 'u32[]', space=smem, size = 0x4, offset = 0x4, fixed_abs, tag = 'smem constant byte address 0x4 - core index']
  #allocation1 [shape = 'u32[144,128]{1,0:T(1,128)}', space=vmem, size = 0x12000, scoped, tag = 'internal scratch']
  %s0 = inlined_call_operand.vmem [shape: f32[2,2], index: 0, kind: input, shape index: {}]
  %s1 = inlined_call_operand.vmem [shape: f32[2,2], index: 1, kind: input, shape index: {}]
  %s2 = inlined_call_operand.vmem [shape: f32[1,128], index: 2, kind: input, shape index: {}]
  %s3 = inlined_call_operand.vmem [shape: f32[1,128], index: 3, kind: output, shape index: {}]
  %s4 = sld [smem:[#allocation0]]
  $region30: #{gda_forward.1} parent=0
    _
  %s6 = ssub.s32 1, %s4
  %s7 = scalar_select 0, %s6, %s4
  $region1: #{gda_forward.1} parent=0
    #allocation2 [shape = 'u8[1024]{0}', space=smem, size = 0x400, scoped, tag = 'input window, operand 0, single buffered']
    #allocation3 [shape = 's32[1]{0}', space=sflag, size = 0x4, scoped, tag = 'scoped memory for gda_forward.1']
    #allocation4 [shape = 'u8[1024]{0}', space=smem, size = 0x400, scoped, tag = 'input window, operand 1, single buffered']
    #allocation5 [shape = 's32[1]{0}', space=sflag, size = 0x4, scoped, tag = 'scoped memory for gda_forward.1']
    %8 = vsyncpa [#allocation3], 0
    %9 = vsyncpa [#allocation5], 0
    // Predicated region
    $region2: #{gda_forward.1} parent=1 // pred_check
      _
    $region3: #{gda_forward.1} parent=1 // pred_check_branch
      %11 = sbr.rel (0) target = $region5
    $region4: #{gda_forward.1} parent=1 // pred_region
      %s13 = ssub.s32 32, 32
      %14 = vsyncadd [#allocation3], %s13
      %s16 = sshll.u32 %s0, 4
      %s17 = int_to_ptr.vmem [resolvable:$true] %s16
      %19 = dma.vmem_to_smem %s17, 32, [#allocation2], [#allocation3]
    $region5: #{gda_forward.1} parent=1 // pred_fallthru
      _
    // Predicated region
    $region6: #{gda_forward.1} parent=1 // pred_check
      _
    $region7: #{gda_forward.1} parent=1 // pred_check_branch
      %21 = sbr.rel (0) target = $region9
    $region8: #{gda_forward.1} parent=1 // pred_region
      %s23 = ssub.s32 32, 32
      %24 = vsyncadd [#allocation5], %s23
      %s26 = sshll.u32 %s1, 4
      %s27 = int_to_ptr.vmem [resolvable:$true] %s26
      %29 = dma.vmem_to_smem %s27, 32, [#allocation4], [#allocation5]
    $region9: #{gda_forward.1} parent=1 // pred_fallthru
      _
    // Predicated region
    $region10: #{gda_forward.1} parent=1 // pred_check
      _
    $region11: #{gda_forward.1} parent=1 // pred_check_branch
      %31 = sbr.rel (0) target = $region13
    $region12: #{gda_forward.1} parent=1 // pred_region
      _
    $region13: #{gda_forward.1} parent=1 // pred_fallthru
      _
    // Predicated region
    $region14: #{gda_forward.1} parent=1 // pred_check
      _
    $region15: #{gda_forward.1} parent=1 // pred_check_branch
      %33 = sbr.rel (0) target = $region17
    $region16: #{gda_forward.1} parent=1 // pred_region
      %34 = dma.done [#allocation3], 32
    $region17: #{gda_forward.1} parent=1 // pred_fallthru
      _
    // Predicated region
    $region18: #{gda_forward.1} parent=1 // pred_check
      _
    $region19: #{gda_forward.1} parent=1 // pred_check_branch
      %36 = sbr.rel (0) target = $region21
    $region20: #{gda_forward.1} parent=1 // pred_region
      %37 = dma.done [#allocation5], 32
    $region21: #{gda_forward.1} parent=1 // pred_fallthru
      _
    %38 = sfence
    %v39 = vlaneseq
    %v40 = vand.u32 %v39, 127
    %v41 = vand.u32 %v40, 3
    %v42 = vand.u32 %v41, 1
    %vm43 = vcmp.eq.s32.totalorder %v42, 0
    %vm44 = vcmp.lt.s32.totalorder %v41, 2
    %s45 = sld [smem:[#allocation2]]
    %s46 = sld [smem:[#allocation2 + $0x1]]
    %s47 = sld [smem:[#allocation2 + $0x80]]
    %s48 = sld [smem:[#allocation2 + $0x81]]
    %s49 = sld [smem:[#allocation4]]
    %s50 = sld [smem:[#allocation4 + $0x1]]
    %s51 = sld [smem:[#allocation4 + $0x80]]
    %s52 = sld [smem:[#allocation4 + $0x81]]
    %v53 = vstv %s45
    %v54 = vstv %s48
    %v55 = vsel %vm43, %v53, %v54
    %v56 = vstv %s49
    %v57 = vstv %s52
    %v58 = vsel %vm43, %v56, %v57
    %v59 = vsel %vm44, %v55, %v58
    %v60 = vstv %s46
    %v61 = vstv %s47
    %v62 = vsel %vm43, %v60, %v61
    %v63 = vstv %s50
    %v64 = vstv %s51
    %v65 = vsel %vm43, %v63, %v64
    %v66 = vsel %vm44, %v62, %v65
    %v67 = vsel %vm43, 1.0, -1.0
    %v68 = vld [vmem:[%s2] sm:$0x1]
    %69 = vrot.lane.b32.xlu0 %v68, 127
    %v70 = vpop.permute.xlu0 %69
    %71 = vrot.lane.b32.xlu0 %v68, 1
    %v72 = vpop.permute.xlu0 %71
    %v73 = vsel %vm43, %v70, %v72
    %v74 = vmul.f32 %v59, %v68
    %v75 = vmul.f32 %v66, %v73
    %v76 = vadd.f32 %v74, %v75
    %77 = vrot.lane.b32.xlu0 %v76, 2
    %v78 = vpop.permute.xlu0 %77
    %v79 = vsel %vm44, %v76, %v78
    %80 = vrot.lane.b32.xlu0 %v76, 126
    %v81 = vpop.permute.xlu0 %80
    %v82 = vsel %vm44, %v81, %v76
    %v83 = vmul.f32 %v68, %v82
    %84 = vrot.lane.b32.xlu0 %v83, 127
    %v85 = vpop.permute.xlu0 %84
    %86 = vrot.lane.b32.xlu0 %v83, 1
    %v87 = vpop.permute.xlu0 %86
    %v88 = vsel %vm43, %v85, %v87
    %v89 = vadd.f32 %v83, %v88
    %v90 = vmul.f32 %v89, %v79
    %v91 = vmul.f32 %v90, %v67
    %v92 = vadd.f32 %v68, %v91
    %93 = vst [vmem:[%s3] sm:$0x1] %v92
    // Predicated region
    $region22: #{gda_forward.1} parent=1 // pred_check
      _
    $region23: #{gda_forward.1} parent=1 // pred_check_branch
      %95 = sbr.rel (0) target = $region25
    $region24: #{gda_forward.1} parent=1 // pred_region
      _
    $region25: #{gda_forward.1} parent=1 // pred_fallthru
      _
    // Predicated region
    $region26: #{gda_forward.1} parent=1 // pred_check
      _
    $region27: #{gda_forward.1} parent=1 // pred_check_branch
      %97 = sbr.rel (0) target = $region29
    $region28: #{gda_forward.1} parent=1 // pred_region
      _
    $region29: #{gda_forward.1} parent=1 // pred_fallthru
      _
    %98 = vsyncpa [#allocation3], 1
    %99 = vsyncpa [#allocation5], 1

</llo_original>
